<compile_context>
chip_gen: v5e
topology: v5e:2x2
jax: 0.10.0
libtpu: 0.0.40
codegen_flags: <defaults>
</compile_context>

<pallas_src>
import functools

import jax
import jax.numpy as jnp
from jax.experimental import pallas as pl
from jax.experimental.pallas import tpu as pltpu

mm = 1e-3  # matches the (implicit) global `mm` used by the PyTorch module


def _round_up(x, m):
    return ((x + m - 1) // m) * m


# ----------------------------------------------------------------------------
# shift-folded, ortho-normalized DFT matrix (symmetric, even N)
# ----------------------------------------------------------------------------
def _centered_dft_matrix(N, inverse=False):
    """M such that M @ v == fftshift( fft(fftshift(v), norm='ortho') ).

    Requires even N (then fftshift == ifftshift, matching the torch module).
    M is symmetric (M^T == M), which the kernel exploits (no transposes).
    """
    k = jnp.arange(N, dtype=jnp.float32)
    n = jnp.arange(N, dtype=jnp.float32)
    sign = 1.0 if inverse else -1.0
    ang = sign * 2.0 * jnp.pi * jnp.outer(k, n) / N
    W = jnp.exp(1j * ang.astype(jnp.complex64)) / jnp.sqrt(jnp.float32(N))
    M = jnp.roll(jnp.roll(W, N // 2, axis=1), N // 2, axis=0)
    return M.astype(jnp.complex64)


# ----------------------------------------------------------------------------
# generation-aware VMEM sizing
# ----------------------------------------------------------------------------
@functools.lru_cache(maxsize=1)
def _vmem_capacity_bytes():
    try:
        return int(pltpu.get_tpu_info().vmem_capacity_bytes)
    except Exception:
        # Conservative fallback (covers v7x's 64 MiB per-TC VMEM).
        return 64 * 1024 * 1024


@functools.lru_cache(maxsize=1)
def _vmem_limit_bytes():
    cap = _vmem_capacity_bytes()
    if cap >= 96 * 1024 * 1024:
        # v5e / v6e (128 MiB physical): leave headroom for compiler scratch.
        return cap - 16 * 1024 * 1024
    # v7x-class (64 MiB physical): ~48 MiB scoped.
    return int(cap * 3 // 4)


def _choose_batch_tile(B, Nxp, Nyp, vmem_limit):
    """Pick the batch-tile size Bt.

    Accounts for the resident DFT matrices (double-buffered) and per-step
    temporaries, caps Bt for IR size, guarantees >=2 grid steps when B>=2
    (v7x megacore), and prefers Bt that minimizes batch padding waste.
    """
    plane = Nxp * Nyp * 4  # one f32 (Nxp, Nyp) plane
    # 2 Mx planes + 2 My planes, double-buffered, plus in-kernel Gauss sums.
    const_bytes = 2 * 2 * (Nxp * Nxp + Nyp * Nyp) * 4
    const_bytes += (Nxp * Nxp + Nyp * Nyp) * 4
    temp_bytes = 10 * plane                      # matmul temporaries per step
    per_b = 8 * plane                            # in (2x2buf) + out (2x2buf)

    budget = int(0.85 * vmem_limit) - const_bytes - temp_bytes
    bt_vmem = max(1, budget // per_b) if budget > 0 else 1

    bt_cap = int(min(B, 16, bt_vmem))            # 16: cap unrolled-IR size
    if B >= 2:
        # Guarantee at least 2 grid steps so v7x's second TensorCore is used.
        bt_cap = min(bt_cap, (B + 1) // 2)
    bt_cap = max(1, bt_cap)

    best_score, best_bt = None, 1
    for bt in range(1, bt_cap + 1):
        bp = _round_up(B, bt)
        ntiles = bp // bt
        # minimize padding waste, then prefer an even tile count, then bigger Bt
        score = (bp - B, ntiles % 2, -bt)
        if best_score is None or score < best_score:
            best_score, best_bt = score, bt
    return best_bt


# ----------------------------------------------------------------------------
# Pallas kernel factory: Out = Mx @ X @ My (complex) via Gauss 3-multiply
# ----------------------------------------------------------------------------
@functools.lru_cache(maxsize=None)
def _build_ft_lens_fn(B, Nx, Ny, Bp, Bt, Nxp, Nyp, vmem_limit):
    num_tiles = Bp // Bt
    f32 = jnp.float32

    def kernel(mxr_ref, mxi_ref, myr_ref, myi_ref, xr_ref, xi_ref,
               or_ref, oi_ref):
        # Constant DFT matrices (resident; same block every grid step).
        mxr = mxr_ref[...]
        mxi = mxi_ref[...]
        mxs = mxr + mxi                       # Gauss sum, computed in-kernel
        myr = myr_ref[...]
        myi = myi_ref[...]
        mys = myr + myi

        # Natural-layout batch tile: per-batch 2-D MXU matmuls, no repacking.
        for b in range(Bt):
            xr = xr_ref[b]                    # (Nxp, Nyp)
            xi = xi_ref[b]

            # stage 1: T = Mx @ X   (complex, Gauss 3-multiply)
            t1 = jnp.dot(mxr, xr, preferred_element_type=f32)
            t2 = jnp.dot(mxi, xi, preferred_element_type=f32)
            t3 = jnp.dot(mxs, xr + xi, preferred_element_type=f32)
            tr = t1 - t2
            ti = t3 - t1 - t2

            # stage 2: Out = T @ My (My symmetric -> no transpose needed)
            u1 = jnp.dot(tr, myr, preferred_element_type=f32)
            u2 = jnp.dot(ti, myi, preferred_element_type=f32)
            u3 = jnp.dot(tr + ti, mys, preferred_element_type=f32)
            or_ref[b] = u1 - u2
            oi_ref[b] = u3 - u1 - u2

    x_spec = pl.BlockSpec((Bt, Nxp, Nyp), lambda i: (i, 0, 0))
    o_spec = pl.BlockSpec((Bt, Nxp, Nyp), lambda i: (i, 0, 0))
    mx_spec = pl.BlockSpec((Nxp, Nxp), lambda i: (0, 0))
    my_spec = pl.BlockSpec((Nyp, Nyp), lambda i: (0, 0))

    call = pl.pallas_call(
        kernel,
        out_shape=(jax.ShapeDtypeStruct((Bp, Nxp, Nyp), jnp.float32),
                   jax.ShapeDtypeStruct((Bp, Nxp, Nyp), jnp.float32)),
        grid_spec=pltpu.PrefetchScalarGridSpec(
            num_scalar_prefetch=0,
            grid=(num_tiles,),
            in_specs=[mx_spec, mx_spec, my_spec, my_spec, x_spec, x_spec],
            out_specs=[o_spec, o_spec],
        ),
        compiler_params=pltpu.CompilerParams(
            dimension_semantics=("parallel",),
            vmem_limit_bytes=int(vmem_limit),
        ),
    )

    def apply_fn(field, mxr, mxi, myr, myi):
        xr = jnp.real(field).astype(jnp.float32)
        xi = jnp.imag(field).astype(jnp.float32)
        pad = ((0, Bp - B), (0, Nxp - Nx), (0, Nyp - Ny))
        xr = jnp.pad(xr, pad)
        xi = jnp.pad(xi, pad)
        out_re, out_im = call(mxr, mxi, myr, myi, xr, xi)
        out = (out_re[:B, :Nx, :Ny]
               + 1j * out_im[:B, :Nx, :Ny]).astype(jnp.complex64)
        return out

    return jax.jit(apply_fn)


# ----------------------------------------------------------------------------
# FT_Lens module equivalent
# ----------------------------------------------------------------------------
class FTLens:
    def __init__(self, delta_x_in, XY_input_grid, wavelength):
        self.focal_length = jnp.float32(18.4 * mm)   # non-trainable parameter
        self.delta_x_in = delta_x_in
        self.XY_input_grid = XY_input_grid
        self.wavelength = wavelength
        self._mat_cache = {}
        self._calculate_delta_x_out()
        self._calculate_output_grid()

    def _calculate_delta_x_out(self):
        gx = self.XY_input_grid[0]
        input_grid_size = gx.max() - gx.min()
        self.delta_x_out = self.wavelength * self.focal_length / input_grid_size
        return self.delta_x_out

    def _calculate_output_grid(self):
        Nx = self.XY_input_grid[0].shape[0]
        Ny = self.XY_input_grid[1].shape[1]
        x = jnp.arange(-Nx / 2, Nx / 2, 1.0) * self.delta_x_out
        y = jnp.arange(-Ny / 2, Ny / 2, 1.0) * self.delta_x_out
        self.XY_output_grid = jnp.meshgrid(x, y, indexing="ij")
        return self.XY_output_grid

    def _get_matrices(self, Nx, Ny, Nxp, Nyp, flag_ifft):
        key = (Nx, Ny, Nxp, Nyp, bool(flag_ifft))
        if key not in self._mat_cache:
            def split_pad(m, Np):
                mr = jnp.real(m).astype(jnp.float32)
                mi = jnp.imag(m).astype(jnp.float32)
                pad = ((0, Np - m.shape[0]), (0, Np - m.shape[1]))
                return jnp.pad(mr, pad), jnp.pad(mi, pad)
            mx = _centered_dft_matrix(Nx, inverse=flag_ifft)
            my = _centered_dft_matrix(Ny, inverse=flag_ifft)
            self._mat_cache[key] = split_pad(mx, Nxp) + split_pad(my, Nyp)
        return self._mat_cache[key]

    def forward(self, input_field, norm="ortho", pad=False, flag_ifft=False):
        # TODO(synk): `pad=True` path (zero-pad + crop) not implemented here.
        assert norm == "ortho" and not pad
        B, Nx, Ny = input_field.shape
        # The roll-by-N//2 fftshift fold is exact only for even sizes.
        assert Nx % 2 == 0 and Ny % 2 == 0, "FTLens requires even Nx and Ny"

        Nxp = _round_up(Nx, 8)          # sublane alignment
        Nyp = _round_up(Ny, 128)        # lane alignment (lane-dense stores)
        vmem_limit = _vmem_limit_bytes()
        Bt = _choose_batch_tile(B, Nxp, Nyp, vmem_limit)
        Bp = _round_up(B, Bt)
        # TODO(synk): add a second (column/Nyp) grid axis for very large Nx/Ny
        # where even a Bt=1 tile exceeds VMEM (e.g. N >= 2048 on v7x).

        mats = self._get_matrices(Nx, Ny, Nxp, Nyp, flag_ifft)
        fn = _build_ft_lens_fn(B, Nx, Ny, Bp, Bt, Nxp, Nyp, vmem_limit)
        return fn(input_field, *mats)


if __name__ == "__main__":
    B, Nx, Ny = 2, 16, 16
    delta_x_in = 8e-6
    xs = (jnp.arange(Nx) - Nx // 2) * delta_x_in
    ys = (jnp.arange(Ny) - Ny // 2) * delta_x_in
    XY_input_grid = jnp.meshgrid(xs, ys, indexing="ij")
    wavelength = 532e-9

    lens = FTLens(delta_x_in, XY_input_grid, wavelength)

    key = jax.random.PRNGKey(0)
    k1, k2 = jax.random.split(key)
    field = (jax.random.normal(k1, (B, Nx, Ny), dtype=jnp.float32)
             + 1j * jax.random.normal(k2, (B, Nx, Ny), dtype=jnp.float32)
             ).astype(jnp.complex64)

    # forward FFT path
    out = jax.block_until_ready(lens.forward(field))
    ref = jnp.fft.fftshift(
        jnp.fft.fft2(jnp.fft.fftshift(field, axes=(-2, -1)),
                     axes=(-2, -1), norm="ortho"),
        axes=(-2, -1))
    assert jnp.allclose(out, ref, atol=1e-4, rtol=1e-4), "fft mismatch"

    # inverse FFT path (flag_ifft=True)
    out_i = jax.block_until_ready(lens.forward(field, flag_ifft=True))
    ref_i = jnp.fft.ifftshift(
        jnp.fft.ifft2(jnp.fft.ifftshift(field, axes=(-2, -1)),
                      axes=(-2, -1), norm="ortho"),
        axes=(-2, -1))
    assert jnp.allclose(out_i, ref_i, atol=1e-4, rtol=1e-4), "ifft mismatch"

    print("KERNEL_OK")
</pallas_src>

<mosaic_0001>
module attributes {stable_mosaic.version = 11 : i64} {
  func.func @kernel(%arg0: i32, %arg1: memref<16x16xf32, #tpu.memory_space<vmem>>, %arg2: memref<16x16xf32, #tpu.memory_space<vmem>>, %arg3: memref<128x128xf32, #tpu.memory_space<vmem>>, %arg4: memref<128x128xf32, #tpu.memory_space<vmem>>, %arg5: memref<1x16x128xf32, #tpu.memory_space<vmem>>, %arg6: memref<1x16x128xf32, #tpu.memory_space<vmem>>, %arg7: memref<1x16x128xf32, #tpu.memory_space<vmem>>, %arg8: memref<1x16x128xf32, #tpu.memory_space<vmem>>) attributes {dimension_semantics = [#tpu.dimension_semantics<parallel>], iteration_bounds = array<i64: 2>, scalar_prefetch = 0 : i64, scratch_operands = 0 : i64, tpu.core_type = #tpu.core_type<tc>, window_params = [{pipeline_mode = #tpu.pipeline_mode<synchronous>, transform_indices = @transform_0, window_bounds = array<i64: 16, 16>}, {pipeline_mode = #tpu.pipeline_mode<synchronous>, transform_indices = @transform_1, window_bounds = array<i64: 16, 16>}, {pipeline_mode = #tpu.pipeline_mode<synchronous>, transform_indices = @transform_2, window_bounds = array<i64: 128, 128>}, {pipeline_mode = #tpu.pipeline_mode<synchronous>, transform_indices = @transform_3, window_bounds = array<i64: 128, 128>}, {transform_indices = @transform_4, window_bounds = array<i64: 1, 16, 128>}, {transform_indices = @transform_5, window_bounds = array<i64: 1, 16, 128>}, {transform_indices = @transform_6, window_bounds = array<i64: 1, 16, 128>}, {transform_indices = @transform_7, window_bounds = array<i64: 1, 16, 128>}]} {
    %c0 = arith.constant 0 : index
    %c0_0 = arith.constant 0 : index
    %0 = vector.load %arg1[%c0, %c0_0] : memref<16x16xf32, #tpu.memory_space<vmem>>, vector<16x16xf32>
    %c0_1 = arith.constant 0 : index
    %c0_2 = arith.constant 0 : index
    %1 = vector.load %arg2[%c0_1, %c0_2] : memref<16x16xf32, #tpu.memory_space<vmem>>, vector<16x16xf32>
    %2 = arith.addf %0, %1 : vector<16x16xf32>
    %c0_3 = arith.constant 0 : index
    %c0_4 = arith.constant 0 : index
    %3 = vector.load %arg3[%c0_3, %c0_4] : memref<128x128xf32, #tpu.memory_space<vmem>>, vector<128x128xf32>
    %c0_5 = arith.constant 0 : index
    %c0_6 = arith.constant 0 : index
    %4 = vector.load %arg4[%c0_5, %c0_6] : memref<128x128xf32, #tpu.memory_space<vmem>>, vector<128x128xf32>
    %5 = arith.addf %3, %4 : vector<128x128xf32>
    %c0_7 = arith.constant 0 : index
    %c0_8 = arith.constant 0 : index
    %c0_9 = arith.constant 0 : index
    %6 = vector.load %arg5[%c0_7, %c0_8, %c0_9] : memref<1x16x128xf32, #tpu.memory_space<vmem>>, vector<1x16x128xf32>
    %7 = vector.shape_cast %6 : vector<1x16x128xf32> to vector<16x128xf32>
    %c0_10 = arith.constant 0 : index
    %c0_11 = arith.constant 0 : index
    %c0_12 = arith.constant 0 : index
    %8 = vector.load %arg6[%c0_10, %c0_11, %c0_12] : memref<1x16x128xf32, #tpu.memory_space<vmem>>, vector<1x16x128xf32>
    %9 = vector.shape_cast %8 : vector<1x16x128xf32> to vector<16x128xf32>
    %cst = arith.constant dense<0.000000e+00> : vector<16x128xf32>
    %10 = tpu.matmul %0, %7, %cst {dimension_numbers = #tpu.dot_dimension_numbers<[1], [0], [0], [1], [0, 0, 1, 1], [], []>} : vector<16x16xf32>, vector<16x128xf32>, vector<16x128xf32> -> vector<16x128xf32>
    %cst_13 = arith.constant dense<0.000000e+00> : vector<16x128xf32>
    %11 = tpu.matmul %1, %9, %cst_13 {dimension_numbers = #tpu.dot_dimension_numbers<[1], [0], [0], [1], [0, 0, 1, 1], [], []>} : vector<16x16xf32>, vector<16x128xf32>, vector<16x128xf32> -> vector<16x128xf32>
    %12 = arith.addf %7, %9 : vector<16x128xf32>
    %cst_14 = arith.constant dense<0.000000e+00> : vector<16x128xf32>
    %13 = tpu.matmul %2, %12, %cst_14 {dimension_numbers = #tpu.dot_dimension_numbers<[1], [0], [0], [1], [0, 0, 1, 1], [], []>} : vector<16x16xf32>, vector<16x128xf32>, vector<16x128xf32> -> vector<16x128xf32>
    %14 = arith.subf %10, %11 : vector<16x128xf32>
    %15 = arith.subf %13, %10 : vector<16x128xf32>
    %16 = arith.subf %15, %11 : vector<16x128xf32>
    %cst_15 = arith.constant dense<0.000000e+00> : vector<16x128xf32>
    %17 = tpu.matmul %14, %3, %cst_15 {dimension_numbers = #tpu.dot_dimension_numbers<[1], [0], [0], [1], [0, 0, 1, 1], [], []>} : vector<16x128xf32>, vector<128x128xf32>, vector<16x128xf32> -> vector<16x128xf32>
    %cst_16 = arith.constant dense<0.000000e+00> : vector<16x128xf32>
    %18 = tpu.matmul %16, %4, %cst_16 {dimension_numbers = #tpu.dot_dimension_numbers<[1], [0], [0], [1], [0, 0, 1, 1], [], []>} : vector<16x128xf32>, vector<128x128xf32>, vector<16x128xf32> -> vector<16x128xf32>
    %19 = arith.addf %14, %16 : vector<16x128xf32>
    %cst_17 = arith.constant dense<0.000000e+00> : vector<16x128xf32>
    %20 = tpu.matmul %19, %5, %cst_17 {dimension_numbers = #tpu.dot_dimension_numbers<[1], [0], [0], [1], [0, 0, 1, 1], [], []>} : vector<16x128xf32>, vector<128x128xf32>, vector<16x128xf32> -> vector<16x128xf32>
    %21 = arith.subf %17, %18 : vector<16x128xf32>
    %c0_18 = arith.constant 0 : index
    %c0_19 = arith.constant 0 : index
    %c0_20 = arith.constant 0 : index
    %22 = vector.load %arg7[%c0_18, %c0_19, %c0_20] : memref<1x16x128xf32, #tpu.memory_space<vmem>>, vector<1x16x128xf32>
    %23 = vector.shape_cast %22 : vector<1x16x128xf32> to vector<16x128xf32>
    %24 = vector.shape_cast %21 : vector<16x128xf32> to vector<1x16x128xf32>
    tpu.vector_store %arg7[%c0_18, %c0_19, %c0_20], %24 {strides = array<i32>} : memref<1x16x128xf32, #tpu.memory_space<vmem>>, vector<1x16x128xf32>,
    %25 = arith.subf %20, %17 : vector<16x128xf32>
    %26 = arith.subf %25, %18 : vector<16x128xf32>
    %c0_21 = arith.constant 0 : index
    %c0_22 = arith.constant 0 : index
    %c0_23 = arith.constant 0 : index
    %27 = vector.load %arg8[%c0_21, %c0_22, %c0_23] : memref<1x16x128xf32, #tpu.memory_space<vmem>>, vector<1x16x128xf32>
    %28 = vector.shape_cast %27 : vector<1x16x128xf32> to vector<16x128xf32>
    %29 = vector.shape_cast %26 : vector<16x128xf32> to vector<1x16x128xf32>
    tpu.vector_store %arg8[%c0_21, %c0_22, %c0_23], %29 {strides = array<i32>} : memref<1x16x128xf32, #tpu.memory_space<vmem>>, vector<1x16x128xf32>,
    return
  }
  func.func @transform_0(%arg0: i32) -> (i32, i32) {
    %c0_i32 = arith.constant 0 : i32
    %c0_i32_0 = arith.constant 0 : i32
    %c0_i32_1 = arith.constant 0 : i32
    return %c0_i32, %c0_i32_0 : i32, i32
  }
  func.func @transform_1(%arg0: i32) -> (i32, i32) {
    %c0_i32 = arith.constant 0 : i32
    %c0_i32_0 = arith.constant 0 : i32
    %c0_i32_1 = arith.constant 0 : i32
    return %c0_i32, %c0_i32_0 : i32, i32
  }
  func.func @transform_2(%arg0: i32) -> (i32, i32) {
    %c0_i32 = arith.constant 0 : i32
    %c0_i32_0 = arith.constant 0 : i32
    %c0_i32_1 = arith.constant 0 : i32
    return %c0_i32, %c0_i32_0 : i32, i32
  }
  func.func @transform_3(%arg0: i32) -> (i32, i32) {
    %c0_i32 = arith.constant 0 : i32
    %c0_i32_0 = arith.constant 0 : i32
    %c0_i32_1 = arith.constant 0 : i32
    return %c0_i32, %c0_i32_0 : i32, i32
  }
  func.func @transform_4(%arg0: i32) -> (i32, i32, i32) {
    %c0_i32 = arith.constant 0 : i32
    %c0_i32_0 = arith.constant 0 : i32
    %c0_i32_1 = arith.constant 0 : i32
    return %arg0, %c0_i32, %c0_i32_0 : i32, i32, i32
  }
  func.func @transform_5(%arg0: i32) -> (i32, i32, i32) {
    %c0_i32 = arith.constant 0 : i32
    %c0_i32_0 = arith.constant 0 : i32
    %c0_i32_1 = arith.constant 0 : i32
    return %arg0, %c0_i32, %c0_i32_0 : i32, i32, i32
  }
  func.func @transform_6(%arg0: i32) -> (i32, i32, i32) {
    %c0_i32 = arith.constant 0 : i32
    %c0_i32_0 = arith.constant 0 : i32
    %c0_i32_1 = arith.constant 0 : i32
    return %arg0, %c0_i32, %c0_i32_0 : i32, i32, i32
  }
  func.func @transform_7(%arg0: i32) -> (i32, i32, i32) {
    %c0_i32 = arith.constant 0 : i32
    %c0_i32_0 = arith.constant 0 : i32
    %c0_i32_1 = arith.constant 0 : i32
    return %arg0, %c0_i32, %c0_i32_0 : i32, i32, i32
  }
}

</mosaic_0001>

<llo_original>
// kernel: custom-call.1
$region0: #{custom-call.1}
  %s0 = inlined_call_operand.hbm [shape: c64[2,16,16], index: 0, kind: input, shape index: {}]
  %s1 = inlined_call_operand.vmem [shape: f32[2,16,16], index: 1, kind: output, shape index: {}]
  %s2 = scalar_lea.hbm %s0, 32
  $region1: #{custom-call.1} parent=0
    #allocation0 [shape = 's32[1]{0}', space=sflag, size = 0x4, scoped, tag = 'scoped memory for custom-call.1']
    %3 = vsyncpa [#allocation0], 0
    %s5 = sshll.u32 %s2, 4
    %s6 = int_to_ptr.hbm [resolvable:$true] %s5
    %s7 = sshll.u32 %s1, 4
    %s8 = int_to_ptr.vmem [resolvable:$true] %s7
    %10 = dma.hbm_to_vmem [thread:$0]  %s6, 512, %s8, [#allocation0]
    %12 = dma.done [#allocation0], 512
    %13 = vsyncpa [#allocation0], 1

// kernel: custom-call
$region0: #{custom-call}
  %s0 = inlined_call_operand.hbm [shape: c64[2,16,16], index: 0, kind: input, shape index: {}]
  %s1 = inlined_call_operand.vmem [shape: f32[2,16,16], index: 1, kind: output, shape index: {}]
  $region1: #{custom-call} parent=0
    #allocation0 [shape = 's32[1]{0}', space=sflag, size = 0x4, scoped, tag = 'scoped memory for custom-call']
    %2 = vsyncpa [#allocation0], 0
    %s4 = sshll.u32 %s0, 4
    %s5 = int_to_ptr.hbm [resolvable:$true] %s4
    %s6 = sshll.u32 %s1, 4
    %s7 = int_to_ptr.vmem [resolvable:$true] %s6
    %9 = dma.hbm_to_vmem [thread:$0]  %s5, 512, %s7, [#allocation0]
    %11 = dma.done [#allocation0], 512
    %12 = vsyncpa [#allocation0], 1

// kernel: custom-call.2
$region0: #{custom-call.2}
  %s0 = inlined_call_operand.vmem [shape: f32[2,16,16], index: 0, kind: input, shape index: {}]
  %s1 = inlined_call_operand.vmem [shape: f32[2,16,16], index: 1, kind: input, shape index: {}]
  %s2 = inlined_call_operand.hbm [shape: c64[2,16,16], index: 2, kind: output, shape index: {}]
  %s3 = scalar_lea.hbm %s2, 32
  $region1: #{custom-call.2} parent=0
    #allocation0 [shape = 's32[1]{0}', space=sflag, size = 0x4, scoped, tag = 'scoped memory for custom-call.2']
    %4 = vsyncpa [#allocation0], 0
    %s6 = sshll.u32 %s0, 4
    %s7 = int_to_ptr.vmem [resolvable:$true] %s6
    %s8 = sshll.u32 %s2, 4
    %s9 = int_to_ptr.hbm [resolvable:$true] %s8
    %11 = dma.vmem_to_hbm [thread:$0]  %s7, 512, %s9, [#allocation0]
    %13 = dma.done [#allocation0], 512
    %14 = vsyncpa [#allocation0], 1
  $region2: #{custom-call.2} parent=0
    #allocation1 [shape = 's32[1]{0}', space=sflag, size = 0x4, scoped, tag = 'scoped memory for custom-call.2']
    %15 = vsyncpa [#allocation1], 0
    %s17 = sshll.u32 %s1, 4
    %s18 = int_to_ptr.vmem [resolvable:$true] %s17
    %s19 = sshll.u32 %s3, 4
    %s20 = int_to_ptr.hbm [resolvable:$true] %s19
    %22 = dma.vmem_to_hbm [thread:$0]  %s18, 512, %s20, [#allocation1]
    %24 = dma.done [#allocation1], 512
    %25 = vsyncpa [#allocation1], 1

// kernel: apply_fn.1
$region0: #{apply_fn.1}
  #allocation0 [shape = 'u32[]', space=smem, size = 0x4, offset = 0x4, fixed_abs, tag = 'smem constant byte address 0x4 - core index']
  #allocation1 [shape = 'u32[72,128]{1,0:T(1,128)}', space=vmem, size = 0x9000, scoped, tag = 'internal scratch']
  %s0 = inlined_call_operand.hbm [shape: f32[16,16], index: 0, kind: input, shape index: {}]
  %s1 = inlined_call_operand.hbm [shape: f32[16,16], index: 1, kind: input, shape index: {}]
  %s2 = inlined_call_operand.vmem [shape: f32[128,128], index: 2, kind: input, shape index: {}]
  %s3 = inlined_call_operand.hbm [shape: f32[128,128], index: 3, kind: input, shape index: {}]
  %s4 = inlined_call_operand.vmem [shape: f32[2,16,128], index: 4, kind: input, shape index: {}]
  %s5 = inlined_call_operand.vmem [shape: f32[2,16,128], index: 5, kind: input, shape index: {}]
  %s6 = inlined_call_operand.vmem [shape: f32[2,16,128], index: 6, kind: output, shape index: {0}]
  %s7 = inlined_call_operand.vmem [shape: f32[2,16,128], index: 7, kind: output, shape index: {1}]
  %8 = xla_tuple %s6, %s7
  %s9 = sld [smem:[#allocation0]]
  $region77: #{apply_fn.1} parent=0
    _
  %s11 = ssub.s32 1, %s9
  %s12 = scalar_select 0, %s11, %s9
  $region1: #{apply_fn.1} parent=0
    #allocation2 [shape = 'u8[8192]{0}', space=vmem, size = 0x2000, scoped, tag = 'input window, operand 0, single buffered']
    #allocation3 [shape = 's32[2]{0}', space=sflag, size = 0x8, scoped, tag = 'scoped memory for apply_fn.1']
    #allocation4 [shape = 'u8[8192]{0}', space=vmem, size = 0x2000, scoped, tag = 'input window, operand 1, single buffered']
    #allocation5 [shape = 's32[1]{0}', space=sflag, size = 0x4, scoped, tag = 'scoped memory for apply_fn.1']
    #allocation6 [shape = 'u8[65536]{0}', space=vmem, size = 0x10000, scoped, tag = 'input window, operand 3, single buffered']
    %13 = vsyncpa [#allocation3], 0
    %14 = vsyncpa [#allocation5], 0
    loop: start=0, step=1, limit=4
    $region2: #{apply_fn.1} parent=1 // loop_pre_header
      _
    $region3: #{apply_fn.1} parent=1 // loop_header
      %s16 = sphi 0, %s20
      %p17 = scmp.ge.s32.totalorder %s16, 4
      %s24 = sphi 0, %s24
      %s26 = sphi 0, %s24
      %s27 = sphi 0, %s26
      %s41 = sphi 0, %s27
      %s45 = sphi 0, %s45
      %s47 = sphi 0, %s45
      %s48 = sphi 0, %s47
      %s62 = sphi 0, %s48
      %s66 = sphi 0, %s66
      %s68 = sphi 0, %s66
      %s69 = sphi 0, %s68
      %s83 = sphi 0, %s69
      %s87 = sphi 0, %s87
      %s89 = sphi 0, %s87
      %s90 = sphi 0, %s89
      %s104 = sphi 0, %s90
      %s110 = sphi 0, %s112
      %s113 = sphi 0, %s110
      %s114 = sphi 0, %s113
      %s130 = sphi 0, %s114
      %s136 = sphi 0, %s138
      %s139 = sphi 0, %s136
      %s140 = sphi 0, %s139
      %s156 = sphi 0, %s140
      %s162 = sphi 0, %s164
      %s165 = sphi 0, %s162
      %s166 = sphi 0, %s165
      %s182 = sphi 0, %s166
      %s188 = sphi 0, %s190
      %s191 = sphi 0, %s188
      %s192 = sphi 0, %s191
      %s208 = sphi 0, %s192
    $region4: #{apply_fn.1} parent=1 // loop_header_branch
      %19 = sbr.rel (%p17) target = $region8
    $region5: #{apply_fn.1} parent=1 // loop_body
      %s21 = ssub.s32 %s16, 1
      %s22 = ssub.s32 %s16, 2
      %s23 = sadd.s32 %s16, 1
      %s25 = sadd.s32 %s24, 1
      %p28 = scmp.eq.s32.totalorder %s16, 1
      %p29 = scmp.ne.s32.totalorder %s24, %s26
      %p30 = scmp.eq.s32.totalorder %s16, 0
      %p31 = por %p29, %p30
      %p32 = scmp.ne.s32.totalorder %s24, %s26
      %p33 = scmp.eq.s32.totalorder %s21, 1
      %p34 = por %p32, %p33
      %p35 = scmp.ne.s32.totalorder %s26, %s27
      %p36 = scmp.eq.s32.totalorder %s21, 0
      %p37 = por %p35, %p36
      %p38 = scmp.ne.s32.totalorder %s26, %s27
      %p39 = scmp.eq.s32.totalorder %s22, 1
      %p40 = por %p38, %p39
      %p42 = scmp.ne.s32.totalorder %s27, %s41
      %p43 = scmp.eq.s32.totalorder %s22, 0
      %p44 = por %p42, %p43
      %s46 = sadd.s32 %s45, 1
      %p49 = scmp.eq.s32.totalorder %s16, 1
      %p50 = scmp.ne.s32.totalorder %s45, %s47
      %p51 = scmp.eq.s32.totalorder %s16, 0
      %p52 = por %p50, %p51
      %p53 = scmp.ne.s32.totalorder %s45, %s47
      %p54 = scmp.eq.s32.totalorder %s21, 1
      %p55 = por %p53, %p54
      %p56 = scmp.ne.s32.totalorder %s47, %s48
      %p57 = scmp.eq.s32.totalorder %s21, 0
      %p58 = por %p56, %p57
      %p59 = scmp.ne.s32.totalorder %s47, %s48
      %p60 = scmp.eq.s32.totalorder %s22, 1
      %p61 = por %p59, %p60
      %p63 = scmp.ne.s32.totalorder %s48, %s62
      %p64 = scmp.eq.s32.totalorder %s22, 0
      %p65 = por %p63, %p64
      %s67 = sadd.s32 %s66, 1
      %p70 = scmp.eq.s32.totalorder %s16, 1
      %p71 = scmp.ne.s32.totalorder %s66, %s68
      %p72 = scmp.eq.s32.totalorder %s16, 0
      %p73 = por %p71, %p72
      %p74 = scmp.ne.s32.totalorder %s66, %s68
      %p75 = scmp.eq.s32.totalorder %s21, 1
      %p76 = por %p74, %p75
      %p77 = scmp.ne.s32.totalorder %s68, %s69
      %p78 = scmp.eq.s32.totalorder %s21, 0
      %p79 = por %p77, %p78
      %p80 = scmp.ne.s32.totalorder %s68, %s69
      %p81 = scmp.eq.s32.totalorder %s22, 1
      %p82 = por %p80, %p81
      %p84 = scmp.ne.s32.totalorder %s69, %s83
      %p85 = scmp.eq.s32.totalorder %s22, 0
      %p86 = por %p84, %p85
      %s88 = sadd.s32 %s87, 1
      %p91 = scmp.eq.s32.totalorder %s16, 1
      %p92 = scmp.ne.s32.totalorder %s87, %s89
      %p93 = scmp.eq.s32.totalorder %s16, 0
      %p94 = por %p92, %p93
      %p95 = scmp.ne.s32.totalorder %s87, %s89
      %p96 = scmp.eq.s32.totalorder %s21, 1
      %p97 = por %p95, %p96
      %p98 = scmp.ne.s32.totalorder %s89, %s90
      %p99 = scmp.eq.s32.totalorder %s21, 0
      %p100 = por %p98, %p99
      %p101 = scmp.ne.s32.totalorder %s89, %s90
      %p102 = scmp.eq.s32.totalorder %s22, 1
      %p103 = por %p101, %p102
      %p105 = scmp.ne.s32.totalorder %s90, %s104
      %p106 = scmp.eq.s32.totalorder %s22, 0
      %p107 = por %p105, %p106
      %s108 = ssub.s32 %s16, %s23
      %p109 = scmp.eq.s32.totalorder %s108, 0
      %s111 = sadd.s32 %s110, 1
      %s112 = scalar_select %p109, %s110, %s111
      %p115 = pneg %p109
      %p116 = scmp.eq.s32.totalorder %s16, 1
      %p117 = por %p115, %p116
      %p118 = scmp.ne.s32.totalorder %s110, %s113
      %p119 = scmp.eq.s32.totalorder %s16, 0
      %p120 = por %p118, %p119
      %p121 = scmp.ne.s32.totalorder %s110, %s113
      %p122 = scmp.eq.s32.totalorder %s21, 1
      %p123 = por %p121, %p122
      %p124 = scmp.ne.s32.totalorder %s113, %s114
      %p125 = scmp.eq.s32.totalorder %s21, 0
      %p126 = por %p124, %p125
      %p127 = scmp.ne.s32.totalorder %s113, %s114
      %p128 = scmp.eq.s32.totalorder %s22, 1
      %p129 = por %p127, %p128
      %p131 = scmp.ne.s32.totalorder %s114, %s130
      %p132 = scmp.eq.s32.totalorder %s22, 0
      %p133 = por %p131, %p132
      %s134 = ssub.s32 %s16, %s23
      %p135 = scmp.eq.s32.totalorder %s134, 0
      %s137 = sadd.s32 %s136, 1
      %s138 = scalar_select %p135, %s136, %s137
      %p141 = pneg %p135
      %p142 = scmp.eq.s32.totalorder %s16, 1
      %p143 = por %p141, %p142
      %p144 = scmp.ne.s32.totalorder %s136, %s139
      %p145 = scmp.eq.s32.totalorder %s16, 0
      %p146 = por %p144, %p145
      %p147 = scmp.ne.s32.totalorder %s136, %s139
      %p148 = scmp.eq.s32.totalorder %s21, 1
      %p149 = por %p147, %p148
      %p150 = scmp.ne.s32.totalorder %s139, %s140
      %p151 = scmp.eq.s32.totalorder %s21, 0
      %p152 = por %p150, %p151
      %p153 = scmp.ne.s32.totalorder %s139, %s140
      %p154 = scmp.eq.s32.totalorder %s22, 1
      %p155 = por %p153, %p154
      %p157 = scmp.ne.s32.totalorder %s140, %s156
      %p158 = scmp.eq.s32.totalorder %s22, 0
      %p159 = por %p157, %p158
      %s160 = ssub.s32 %s16, %s23
      %p161 = scmp.eq.s32.totalorder %s160, 0
      %s163 = sadd.s32 %s162, 1
      %s164 = scalar_select %p161, %s162, %s163
      %p167 = pneg %p161
      %p168 = scmp.eq.s32.totalorder %s16, 1
      %p169 = por %p167, %p168
      %p170 = scmp.ne.s32.totalorder %s162, %s165
      %p171 = scmp.eq.s32.totalorder %s16, 0
      %p172 = por %p170, %p171
      %p173 = scmp.ne.s32.totalorder %s162, %s165
      %p174 = scmp.eq.s32.totalorder %s21, 1
      %p175 = por %p173, %p174
      %p176 = scmp.ne.s32.totalorder %s165, %s166
      %p177 = scmp.eq.s32.totalorder %s21, 0
      %p178 = por %p176, %p177
      %p179 = scmp.ne.s32.totalorder %s165, %s166
      %p180 = scmp.eq.s32.totalorder %s22, 1
      %p181 = por %p179, %p180
      %p183 = scmp.ne.s32.totalorder %s166, %s182
      %p184 = scmp.eq.s32.totalorder %s22, 0
      %p185 = por %p183, %p184
      %s186 = ssub.s32 %s16, %s23
      %p187 = scmp.eq.s32.totalorder %s186, 0
      %s189 = sadd.s32 %s188, 1
      %s190 = scalar_select %p187, %s188, %s189
      %p193 = pneg %p187
      %p194 = scmp.eq.s32.totalorder %s16, 1
      %p195 = por %p193, %p194
      %p196 = scmp.ne.s32.totalorder %s188, %s191
      %p197 = scmp.eq.s32.totalorder %s16, 0
      %p198 = por %p196, %p197
      %p199 = scmp.ne.s32.totalorder %s188, %s191
      %p200 = scmp.eq.s32.totalorder %s21, 1
      %p201 = por %p199, %p200
      %p202 = scmp.ne.s32.totalorder %s191, %s192
      %p203 = scmp.eq.s32.totalorder %s21, 0
      %p204 = por %p202, %p203
      %p205 = scmp.ne.s32.totalorder %s191, %s192
      %p206 = scmp.eq.s32.totalorder %s22, 1
      %p207 = por %p205, %p206
      %p209 = scmp.ne.s32.totalorder %s192, %s208
      %p210 = scmp.eq.s32.totalorder %s22, 0
      %p211 = por %p209, %p210
      %p212 = scmp.le.s32.totalorder 1, %s16
      %p213 = scmp.lt.s32.totalorder %s16, 3
      %p214 = pnand %p212, %p213
      %p215 = pneg %p214
      // Predicated region
      $region9: #{apply_fn.1} parent=5 // pred_check
        _
      $region10: #{apply_fn.1} parent=5 // pred_check_branch
        %217 = sbr.rel (%p214) target = $region12
      $region11: #{apply_fn.1} parent=5 // pred_region
        %s218 = ssub.s32 %s16, 1
        // Predicated region
        $region13: #{apply_fn.1} parent=11 // pred_check
          %p219 = pneg %p37
        $region14: #{apply_fn.1} parent=11 // pred_check_branch
          %221 = sbr.rel (%p219) target = $region16
        $region15: #{apply_fn.1} parent=11 // pred_region
          %223 = vsyncadd [#allocation3], 0
          %s224 = sshll.u32 %s0, 4
          %s225 = int_to_ptr.hbm [resolvable:$true] %s224
          %s226 = sshll.u32 [#allocation2], 4
          %s227 = int_to_ptr.vmem [resolvable:$true] %s226
          %232 = dma.hbm_to_vmem [thread:$0]  %s225, 256, %s227, [#allocation3], 128, 128, 8
        $region16: #{apply_fn.1} parent=11 // pred_fallthru
          _
        // Predicated region
        $region17: #{apply_fn.1} parent=11 // pred_check
          %p233 = pneg %p58
        $region18: #{apply_fn.1} parent=11 // pred_check_branch
          %235 = sbr.rel (%p233) target = $region20
        $region19: #{apply_fn.1} parent=11 // pred_region
          %237 = vsyncadd [#allocation5], 0
          %s238 = sshll.u32 %s1, 4
          %s239 = int_to_ptr.hbm [resolvable:$true] %s238
          %s240 = sshll.u32 [#allocation4], 4
          %s241 = int_to_ptr.vmem [resolvable:$true] %s240
          %246 = dma.hbm_to_vmem [thread:$0]  %s239, 256, %s241, [#allocation5], 128, 128, 8
        $region20: #{apply_fn.1} parent=11 // pred_fallthru
          _
        // Predicated region
        $region21: #{apply_fn.1} parent=11 // pred_check
          %p247 = pneg %p79
        $region22: #{apply_fn.1} parent=11 // pred_check_branch
          %249 = sbr.rel (%p247) target = $region24
        $region23: #{apply_fn.1} parent=11 // pred_region
          _
        $region24: #{apply_fn.1} parent=11 // pred_fallthru
          _
        // Predicated region
        $region25: #{apply_fn.1} parent=11 // pred_check
          %p250 = pneg %p100
        $region26: #{apply_fn.1} parent=11 // pred_check_branch
          %252 = sbr.rel (%p250) target = $region28
        $region27: #{apply_fn.1} parent=11 // pred_region
          %254 = vsyncadd [#allocation5], 0
          %s255 = sshll.u32 %s3, 4
          %s256 = int_to_ptr.hbm [resolvable:$true] %s255
          %s257 = sshll.u32 [#allocation6], 4
          %s258 = int_to_ptr.vmem [resolvable:$true] %s257
          %263 = dma.hbm_to_vmem [thread:$0]  %s256, 2048, %s258, [#allocation5], 128, 128, 8
        $region28: #{apply_fn.1} parent=11 // pred_fallthru
          _
      $region12: #{apply_fn.1} parent=5 // pred_fallthru
        _
      %p264 = scmp.lt.s32.totalorder %s16, 2
      // Predicated region
      $region29: #{apply_fn.1} parent=5 // pred_check
        %p265 = pneg %p264
      $region30: #{apply_fn.1} parent=5 // pred_check_branch
        %267 = sbr.rel (%p265) target = $region32
      $region31: #{apply_fn.1} parent=5 // pred_region
        // Predicated region
        $region33: #{apply_fn.1} parent=31 // pred_check
          %p268 = pneg %p120
        $region34: #{apply_fn.1} parent=31 // pred_check_branch
          %270 = sbr.rel (%p268) target = $region36
        $region35: #{apply_fn.1} parent=31 // pred_region
          %p271 = scmp.lt.s32.totalorder %s16, 1
          %s272 = scalar_select %p271, %s16, 1
          %s273 = smul.addr %s272, 2
          %s274 = smul.addr %s273, 8
          %s275 = scalar_lea.vmem %s4, %s274
        $region36: #{apply_fn.1} parent=31 // pred_fallthru
          _
        // Predicated region
        $region37: #{apply_fn.1} parent=31 // pred_check
          %p276 = pneg %p146
        $region38: #{apply_fn.1} parent=31 // pred_check_branch
          %278 = sbr.rel (%p276) target = $region40
        $region39: #{apply_fn.1} parent=31 // pred_region
          %p279 = scmp.lt.s32.totalorder %s16, 1
          %s280 = scalar_select %p279, %s16, 1
          %s281 = smul.addr %s280, 2
          %s282 = smul.addr %s281, 8
          %s283 = scalar_lea.vmem %s5, %s282
        $region40: #{apply_fn.1} parent=31 // pred_fallthru
          _
      $region32: #{apply_fn.1} parent=5 // pred_fallthru
        _
      %p284 = scmp.le.s32.totalorder 1, %s16
      %p285 = scmp.lt.s32.totalorder %s16, 3
      %p286 = pnand %p284, %p285
      %p287 = pneg %p286
      // Predicated region
      $region41: #{apply_fn.1} parent=5 // pred_check
        _
      $region42: #{apply_fn.1} parent=5 // pred_check_branch
        %289 = sbr.rel (%p286) target = $region44
      $region43: #{apply_fn.1} parent=5 // pred_region
        %s290 = ssub.s32 %s16, 1
        // Predicated region
        $region45: #{apply_fn.1} parent=43 // pred_check
          %p291 = pneg %p37
        $region46: #{apply_fn.1} parent=43 // pred_check_branch
          %293 = sbr.rel (%p291) target = $region48
        $region47: #{apply_fn.1} parent=43 // pred_region
          %295 = dma.done [#allocation3], 256
        $region48: #{apply_fn.1} parent=43 // pred_fallthru
          _
        // Predicated region
        $region49: #{apply_fn.1} parent=43 // pred_check
          %p296 = pneg %p58
        $region50: #{apply_fn.1} parent=43 // pred_check_branch
          %298 = sbr.rel (%p296) target = $region52
        $region51: #{apply_fn.1} parent=43 // pred_region
          %300 = dma.done [#allocation5], 256
        $region52: #{apply_fn.1} parent=43 // pred_fallthru
          _
        // Predicated region
        $region53: #{apply_fn.1} parent=43 // pred_check
          %p301 = pneg %p100
        $region54: #{apply_fn.1} parent=43 // pred_check_branch
          %303 = sbr.rel (%p301) target = $region56
        $region55: #{apply_fn.1} parent=43 // pred_region
          %305 = dma.done [#allocation5], 2048
        $region56: #{apply_fn.1} parent=43 // pred_fallthru
          _
        %p306 = pneg %p37
        %p307 = pneg %p34
        %p308 = pneg %p58
        %p309 = pneg %p55
        %p310 = pneg %p79
        %p311 = pneg %p76
        %p312 = pneg %p100
        %p313 = pneg %p97
        %p314 = scmp.lt.s32.totalorder %s21, 1
        %s315 = scalar_select %p314, %s21, 1
        %s316 = smul.addr %s315, 2
        %s317 = smul.addr %s316, 8
        %s318 = scalar_lea.vmem %s4, %s317
        %p319 = pneg %p126
        %p320 = pneg %p123
        %p321 = scmp.lt.s32.totalorder %s21, 1
        %s322 = scalar_select %p321, %s21, 1
        %s323 = smul.addr %s322, 2
        %s324 = smul.addr %s323, 8
        %s325 = scalar_lea.vmem %s5, %s324
        %p326 = pneg %p152
        %p327 = pneg %p149
        %p328 = pneg %p178
        %p329 = pneg %p175
        %p330 = scmp.lt.s32.totalorder %s21, 1
        %s331 = scalar_select %p330, %s21, 1
        %s332 = smul.addr %s331, 2
        %s333 = smul.addr %s332, 8
        %s334 = scalar_lea.vmem %s6, %s333
        %p335 = pneg %p204
        %p336 = pneg %p201
        %p337 = scmp.lt.s32.totalorder %s21, 1
        %s338 = scalar_select %p337, %s21, 1
        %s339 = smul.addr %s338, 2
        %s340 = smul.addr %s339, 8
        %s341 = scalar_lea.vmem %s7, %s340
        %p342 = scmp.lt.s32.totalorder %s21, 1
        %s343 = scalar_select %p342, %s21, 1
        %s344 = smul.addr %s343, 2
        %s345 = smul.addr %s344, 8
        %s346 = scalar_lea.vmem %s4, %s345
        %p347 = scmp.lt.s32.totalorder %s21, 1
        %s348 = scalar_select %p347, %s21, 1
        %s349 = smul.addr %s348, 2
        %s350 = smul.addr %s349, 8
        %s351 = scalar_lea.vmem %s5, %s350
        %p352 = scmp.lt.s32.totalorder %s21, 1
        %s353 = scalar_select %p352, %s21, 1
        %s354 = smul.addr %s353, 2
        %s355 = smul.addr %s354, 8
        %s356 = scalar_lea.vmem %s6, %s355
        %p357 = scmp.lt.s32.totalorder %s21, 1
        %s358 = scalar_select %p357, %s21, 1
        %s359 = smul.addr %s358, 2
        %s360 = smul.addr %s359, 8
        %s361 = scalar_lea.vmem %s7, %s360
        %v362 = vld [vmem:[#allocation2] sm:$0xff]
        %v363 = vld [vmem:[#allocation2 + $0x8] sm:$0xff]
        %v364 = vld [vmem:[#allocation4] sm:$0xff]
        %v365 = vld [vmem:[#allocation4 + $0x8] sm:$0xff]
        %v366 = vadd.f32 %v362, %v364
        %v367 = vadd.f32 %v363, %v365
        %v368 = vld [vmem:[%s2] sm:$0xff]
        %v369 = vld [vmem:[%s2 + $0x8] sm:$0xff]
        %v370 = vld [vmem:[%s2 + $0x10] sm:$0xff]
        %v371 = vld [vmem:[%s2 + $0x18] sm:$0xff]
        %v372 = vld [vmem:[%s2 + $0x20] sm:$0xff]
        %v373 = vld [vmem:[%s2 + $0x28] sm:$0xff]
        %v374 = vld [vmem:[%s2 + $0x30] sm:$0xff]
        %v375 = vld [vmem:[%s2 + $0x38] sm:$0xff]
        %v376 = vld [vmem:[%s2 + $0x40] sm:$0xff]
        %v377 = vld [vmem:[%s2 + $0x48] sm:$0xff]
        %v378 = vld [vmem:[%s2 + $0x50] sm:$0xff]
        %v379 = vld [vmem:[%s2 + $0x58] sm:$0xff]
        %v380 = vld [vmem:[%s2 + $0x60] sm:$0xff]
        %v381 = vld [vmem:[%s2 + $0x68] sm:$0xff]
        %v382 = vld [vmem:[%s2 + $0x70] sm:$0xff]
        %v383 = vld [vmem:[%s2 + $0x78] sm:$0xff]
        %v384 = vld [vmem:[#allocation6] sm:$0xff]
        %v385 = vld [vmem:[#allocation6 + $0x8] sm:$0xff]
        %v386 = vld [vmem:[#allocation6 + $0x10] sm:$0xff]
        %v387 = vld [vmem:[#allocation6 + $0x18] sm:$0xff]
        %v388 = vld [vmem:[#allocation6 + $0x20] sm:$0xff]
        %v389 = vld [vmem:[#allocation6 + $0x28] sm:$0xff]
        %v390 = vld [vmem:[#allocation6 + $0x30] sm:$0xff]
        %v391 = vld [vmem:[#allocation6 + $0x38] sm:$0xff]
        %v392 = vld [vmem:[#allocation6 + $0x40] sm:$0xff]
        %v393 = vld [vmem:[#allocation6 + $0x48] sm:$0xff]
        %v394 = vld [vmem:[#allocation6 + $0x50] sm:$0xff]
        %v395 = vld [vmem:[#allocation6 + $0x58] sm:$0xff]
        %v396 = vld [vmem:[#allocation6 + $0x60] sm:$0xff]
        %v397 = vld [vmem:[#allocation6 + $0x68] sm:$0xff]
        %v398 = vld [vmem:[#allocation6 + $0x70] sm:$0xff]
        %v399 = vld [vmem:[#allocation6 + $0x78] sm:$0xff]
        %v400 = vadd.f32 %v368, %v384
        %v401 = vadd.f32 %v369, %v385
        %v402 = vadd.f32 %v370, %v386
        %v403 = vadd.f32 %v371, %v387
        %v404 = vadd.f32 %v372, %v388
        %v405 = vadd.f32 %v373, %v389
        %v406 = vadd.f32 %v374, %v390
        %v407 = vadd.f32 %v375, %v391
        %v408 = vadd.f32 %v376, %v392
        %v409 = vadd.f32 %v377, %v393
        %v410 = vadd.f32 %v378, %v394
        %v411 = vadd.f32 %v379, %v395
        %v412 = vadd.f32 %v380, %v396
        %v413 = vadd.f32 %v381, %v397
        %v414 = vadd.f32 %v382, %v398
        %v415 = vadd.f32 %v383, %v399
        %v416 = vld [vmem:[%s346] sm:$0xff]
        %v417 = vld [vmem:[%s346 + $0x8] sm:$0xff]
        %v418 = vld [vmem:[%s351] sm:$0xff]
        %v419 = vld [vmem:[%s351 + $0x8] sm:$0xff]
        %vm420 = vcmask 130048
        %v422 = vsel %vm420, %v362, 0
        %v425 = vsel %vm420, %v363, 0
        %427 = vmatpush.msra.mxu0 0.0
        %428 = vmatpush.msra.mxu0 0.0
        %429 = vmatpush.msra.mxu0 0.0
        %430 = vmatpush.msra.mxu0 0.0
        %431 = vmatpush.msra.mxu0 0.0
        %432 = vmatpush.msra.mxu0 0.0
        %433 = vmatpush.msra.mxu0 0.0
        %434 = vmatpush.msra.mxu0 0.0
        %435 = vmatpush.msra.mxu0 0.0
        %436 = vmatpush.msra.mxu0 0.0
        %437 = vmatpush.msra.mxu0 0.0
        %438 = vmatpush.msra.mxu0 0.0
        %439 = vmatpush.msra.mxu0 0.0
        %440 = vmatpush.msra.mxu0 0.0
        %441 = vmatpush.msra.mxu0 %v417
        %442 = vmatpush.msra.mxu0 %v416
        %443 = vmatmul.f32.gmra.mxu0 %v422
        %v444 = vpop.f32.mrf.mxu0
        %v445 = vadd.f32 0.0, %v444
        %446 = vmatmul.f32.gmra.mxu0 %v425
        %v447 = vpop.f32.mrf.mxu0
        %v448 = vadd.f32 0.0, %v447
        %449 = vdwg.mxu0
        %v451 = vsel %vm420, %v364, 0
        %v454 = vsel %vm420, %v365, 0
        %456 = vmatpush.msra.mxu0 0.0
        %457 = vmatpush.msra.mxu0 0.0
        %458 = vmatpush.msra.mxu0 0.0
        %459 = vmatpush.msra.mxu0 0.0
        %460 = vmatpush.msra.mxu0 0.0
        %461 = vmatpush.msra.mxu0 0.0
        %462 = vmatpush.msra.mxu0 0.0
        %463 = vmatpush.msra.mxu0 0.0
        %464 = vmatpush.msra.mxu0 0.0
        %465 = vmatpush.msra.mxu0 0.0
        %466 = vmatpush.msra.mxu0 0.0
        %467 = vmatpush.msra.mxu0 0.0
        %468 = vmatpush.msra.mxu0 0.0
        %469 = vmatpush.msra.mxu0 0.0
        %470 = vmatpush.msra.mxu0 %v419
        %471 = vmatpush.msra.mxu0 %v418
        %472 = vmatmul.f32.gmra.mxu0 %v451
        %v473 = vpop.f32.mrf.mxu0
        %v474 = vadd.f32 0.0, %v473
        %475 = vmatmul.f32.gmra.mxu0 %v454
        %v476 = vpop.f32.mrf.mxu0
        %v477 = vadd.f32 0.0, %v476
        %478 = vdwg.mxu0
        %v479 = vadd.f32 %v416, %v418
        %v480 = vadd.f32 %v417, %v419
        %v482 = vsel %vm420, %v366, 0
        %v485 = vsel %vm420, %v367, 0
        %487 = vmatpush.msra.mxu0 0.0
        %488 = vmatpush.msra.mxu0 0.0
        %489 = vmatpush.msra.mxu0 0.0
        %490 = vmatpush.msra.mxu0 0.0
        %491 = vmatpush.msra.mxu0 0.0
        %492 = vmatpush.msra.mxu0 0.0
        %493 = vmatpush.msra.mxu0 0.0
        %494 = vmatpush.msra.mxu0 0.0
        %495 = vmatpush.msra.mxu0 0.0
        %496 = vmatpush.msra.mxu0 0.0
        %497 = vmatpush.msra.mxu0 0.0
        %498 = vmatpush.msra.mxu0 0.0
        %499 = vmatpush.msra.mxu0 0.0
        %500 = vmatpush.msra.mxu0 0.0
        %501 = vmatpush.msra.mxu0 %v480
        %502 = vmatpush.msra.mxu0 %v479
        %503 = vmatmul.f32.gmra.mxu0 %v482
        %v504 = vpop.f32.mrf.mxu0
        %v505 = vadd.f32 0.0, %v504
        %506 = vmatmul.f32.gmra.mxu0 %v485
        %v507 = vpop.f32.mrf.mxu0
        %v508 = vadd.f32 0.0, %v507
        %509 = vdwg.mxu0
        %v510 = vsub.f32 %v445, %v474
        %v511 = vsub.f32 %v448, %v477
        %v512 = vsub.f32 %v505, %v445
        %v513 = vsub.f32 %v508, %v448
        %v514 = vsub.f32 %v512, %v474
        %v515 = vsub.f32 %v513, %v477
        %516 = vmatpush.msra.mxu0 %v383
        %517 = vmatpush.msra.mxu0 %v382
        %518 = vmatpush.msra.mxu0 %v381
        %519 = vmatpush.msra.mxu0 %v380
        %520 = vmatpush.msra.mxu0 %v379
        %521 = vmatpush.msra.mxu0 %v378
        %522 = vmatpush.msra.mxu0 %v377
        %523 = vmatpush.msra.mxu0 %v376
        %524 = vmatpush.msra.mxu0 %v375
        %525 = vmatpush.msra.mxu0 %v374
        %526 = vmatpush.msra.mxu0 %v373
        %527 = vmatpush.msra.mxu0 %v372
        %528 = vmatpush.msra.mxu0 %v371
        %529 = vmatpush.msra.mxu0 %v370
        %530 = vmatpush.msra.mxu0 %v369
        %531 = vmatpush.msra.mxu0 %v368
        %532 = vmatmul.f32.gmra.mxu0 %v510
        %v533 = vpop.f32.mrf.mxu0
        %v534 = vadd.f32 0.0, %v533
        %535 = vmatmul.f32.gmra.mxu0 %v511
        %v536 = vpop.f32.mrf.mxu0
        %v537 = vadd.f32 0.0, %v536
        %538 = vdwg.mxu0
        %539 = vmatpush.msra.mxu0 %v399
        %540 = vmatpush.msra.mxu0 %v398
        %541 = vmatpush.msra.mxu0 %v397
        %542 = vmatpush.msra.mxu0 %v396
        %543 = vmatpush.msra.mxu0 %v395
        %544 = vmatpush.msra.mxu0 %v394
        %545 = vmatpush.msra.mxu0 %v393
        %546 = vmatpush.msra.mxu0 %v392
        %547 = vmatpush.msra.mxu0 %v391
        %548 = vmatpush.msra.mxu0 %v390
        %549 = vmatpush.msra.mxu0 %v389
        %550 = vmatpush.msra.mxu0 %v388
        %551 = vmatpush.msra.mxu0 %v387
        %552 = vmatpush.msra.mxu0 %v386
        %553 = vmatpush.msra.mxu0 %v385
        %554 = vmatpush.msra.mxu0 %v384
        %555 = vmatmul.f32.gmra.mxu0 %v514
        %v556 = vpop.f32.mrf.mxu0
        %v557 = vadd.f32 0.0, %v556
        %558 = vmatmul.f32.gmra.mxu0 %v515
        %v559 = vpop.f32.mrf.mxu0
        %v560 = vadd.f32 0.0, %v559
        %561 = vdwg.mxu0
        %v562 = vadd.f32 %v510, %v514
        %v563 = vadd.f32 %v511, %v515
        %564 = vmatpush.msra.mxu0 %v415
        %565 = vmatpush.msra.mxu0 %v414
        %566 = vmatpush.msra.mxu0 %v413
        %567 = vmatpush.msra.mxu0 %v412
        %568 = vmatpush.msra.mxu0 %v411
        %569 = vmatpush.msra.mxu0 %v410
        %570 = vmatpush.msra.mxu0 %v409
        %571 = vmatpush.msra.mxu0 %v408
        %572 = vmatpush.msra.mxu0 %v407
        %573 = vmatpush.msra.mxu0 %v406
        %574 = vmatpush.msra.mxu0 %v405
        %575 = vmatpush.msra.mxu0 %v404
        %576 = vmatpush.msra.mxu0 %v403
        %577 = vmatpush.msra.mxu0 %v402
        %578 = vmatpush.msra.mxu0 %v401
        %579 = vmatpush.msra.mxu0 %v400
        %580 = vmatmul.f32.gmra.mxu0 %v562
        %v581 = vpop.f32.mrf.mxu0
        %v582 = vadd.f32 0.0, %v581
        %583 = vmatmul.f32.gmra.mxu0 %v563
        %v584 = vpop.f32.mrf.mxu0
        %v585 = vadd.f32 0.0, %v584
        %586 = vdwg.mxu0
        %v587 = vsub.f32 %v534, %v557
        %v588 = vsub.f32 %v537, %v560
        %589 = vst [vmem:[%s356] sm:$0xff] %v587
        %590 = vst [vmem:[%s356 + $0x8] sm:$0xff] %v588
        %v591 = vsub.f32 %v582, %v534
        %v592 = vsub.f32 %v585, %v537
        %v593 = vsub.f32 %v591, %v557
        %v594 = vsub.f32 %v592, %v560
        %595 = vst [vmem:[%s361] sm:$0xff] %v593
        %596 = vst [vmem:[%s361 + $0x8] sm:$0xff] %v594
        %p597 = scmp.lt.s32.totalorder %s21, 1
        %s598 = scalar_select %p597, %s21, 1
        %s599 = smul.addr %s598, 2
        %s600 = smul.addr %s599, 8
        %s601 = scalar_lea.vmem %s6, %s600
        %p602 = scmp.lt.s32.totalorder %s21, 1
        %s603 = scalar_select %p602, %s21, 1
        %s604 = smul.addr %s603, 2
        %s605 = smul.addr %s604, 8
        %s606 = scalar_lea.vmem %s7, %s605
        // Predicated region
        $region57: #{apply_fn.1} parent=43 // pred_check
          %p607 = pneg %p175
        $region58: #{apply_fn.1} parent=43 // pred_check_branch
          %609 = sbr.rel (%p607) target = $region60
        $region59: #{apply_fn.1} parent=43 // pred_region
          _
        $region60: #{apply_fn.1} parent=43 // pred_fallthru
          _
        // Predicated region
        $region61: #{apply_fn.1} parent=43 // pred_check
          %p610 = pneg %p201
        $region62: #{apply_fn.1} parent=43 // pred_check_branch
          %612 = sbr.rel (%p610) target = $region64
        $region63: #{apply_fn.1} parent=43 // pred_region
          _
        $region64: #{apply_fn.1} parent=43 // pred_fallthru
          _
      $region44: #{apply_fn.1} parent=5 // pred_fallthru
        _
      %p613 = scmp.le.s32.totalorder 2, %s16
      // Predicated region
      $region65: #{apply_fn.1} parent=5 // pred_check
        %p614 = pneg %p613
      $region66: #{apply_fn.1} parent=5 // pred_check_branch
        %616 = sbr.rel (%p614) target = $region68
      $region67: #{apply_fn.1} parent=5 // pred_region
        %s617 = ssub.s32 %s16, 2
        // Predicated region
        $region69: #{apply_fn.1} parent=67 // pred_check
          %p618 = pneg %p181
        $region70: #{apply_fn.1} parent=67 // pred_check_branch
          %620 = sbr.rel (%p618) target = $region72
        $region71: #{apply_fn.1} parent=67 // pred_region
          %p621 = scmp.lt.s32.totalorder %s22, 1
          %s622 = scalar_select %p621, %s22, 1
          %s623 = smul.addr %s622, 2
          %s624 = smul.addr %s623, 8
          %s625 = scalar_lea.vmem %s6, %s624
        $region72: #{apply_fn.1} parent=67 // pred_fallthru
          _
        // Predicated region
        $region73: #{apply_fn.1} parent=67 // pred_check
          %p626 = pneg %p207
        $region74: #{apply_fn.1} parent=67 // pred_check_branch
          %628 = sbr.rel (%p626) target = $region76
        $region75: #{apply_fn.1} parent=67 // pred_region
          %p629 = scmp.lt.s32.totalorder %s22, 1
          %s630 = scalar_select %p629, %s22, 1
          %s631 = smul.addr %s630, 2
          %s632 = smul.addr %s631, 8
          %s633 = scalar_lea.vmem %s7, %s632
        $region76: #{apply_fn.1} parent=67 // pred_fallthru
          _
      $region68: #{apply_fn.1} parent=5 // pred_fallthru
        _
    $region6: #{apply_fn.1} parent=1 // loop_footer
      %s20 = sadd.s32 1, %s16
    $region7: #{apply_fn.1} parent=1 // loop_footer_branch
      %15 = sbr.rel target = $region3
    $region8: #{apply_fn.1} parent=1 // loop_exit
      _
    %634 = vsyncpa [#allocation3], 1
    %s635 = scalar_lea.sflag [#allocation3], 1
    %636 = vsyncpa %s635, 1
    %637 = vsyncpa [#allocation5], 1

</llo_original>
